<compile_context>
chip_gen: v6e
topology: v6e:2x2x1
jax: 0.10.0
libtpu: 0.0.40
codegen_flags: <defaults>
</compile_context>

<pallas_src>
import functools

import numpy as np
import jax
import jax.numpy as jnp
from jax.experimental import pallas as pl
from jax.experimental.pallas import tpu as pltpu


def _round_up(x, m):
    return ((x + m - 1) // m) * m


# ---------------------------------------------------------------------------
# Fused NCF kernel: one row tile per grid step, all weights resident in VMEM.
# ---------------------------------------------------------------------------
def _ncf_kernel(x_ref, w1_ref, b1_ref, w2_ref, b2_ref,
                wpg_ref, wph_ref, bp_ref, o_ref, *, feature_dim):
    # x is the packed [user | item] row tile: (TN, 2D) bf16.
    x = x_ref[...]

    # --- GMF branch: user * item, kept in f32 on the VPU --------------------
    xf = x.astype(jnp.float32)
    gmf = xf[:, :feature_dim] * xf[:, feature_dim:]           # (TN, D)

    # --- MLP layer 1: the packed input already IS concat([user, item]) ------
    h1 = jnp.dot(x, w1_ref[...], preferred_element_type=jnp.float32)
    h1 = jnp.maximum(h1 + b1_ref[...], 0.0)
    # TODO(synk): nn.Dropout(p=0.5) implemented with inference semantics (identity).

    # --- MLP layer 2 ---------------------------------------------------------
    h2 = jnp.dot(h1.astype(jnp.bfloat16), w2_ref[...],
                 preferred_element_type=jnp.float32)
    h2 = jnp.maximum(h2 + b2_ref[...], 0.0)
    # TODO(synk): second nn.Dropout(p=0.5) is also identity (inference).

    # --- predict_layer: concat([gmf, h2]) @ Wp + bp --------------------------
    # Single real output column -> VPU multiply + lane reduction instead of two
    # MXU matmuls with 127/128 dead columns; this also yields the (TN, 1)
    # output tile directly (4 B/row writeback).
    out = (jnp.sum(gmf * wpg_ref[...], axis=-1, keepdims=True)
           + jnp.sum(h2 * wph_ref[...], axis=-1, keepdims=True)
           + bp_ref[...])
    o_ref[...] = out.astype(o_ref.dtype)


def ncf_forward(user_feature, item_feature, params, *, tile_n=512):
    """NCF forward. Returns (N, 1) f32 logits."""
    n, d = user_feature.shape
    assert item_feature.shape == (n, d)
    assert d == params["wpg"].shape[1]

    h1_dim = params["w1"].shape[1]
    h2_dim = params["w2"].shape[1]

    # Row tile: multiple of 16 sublanes (bf16 input). Prefer >= 2 grid steps
    # over the "parallel" row axis when the batch allows it so both v7x
    # TensorCores get work (if profiling still shows one TC busy, switch the
    # semantics below to pltpu.CORE_PARALLEL).
    tn = min(tile_n, _round_up(n, 16))
    if _round_up(n, tn) // tn < 2 and n > 16:
        tn = _round_up((n + 1) // 2, 16)
    n_pad = _round_up(n, tn)

    # Pack [user | item] once as bf16 (single fused XLA pass). The kernel then
    # reads ~128 B/row and uses the packed block directly for MLP layer 1.
    x = jnp.concatenate([user_feature, item_feature], axis=1).astype(jnp.bfloat16)
    if n_pad != n:
        x = jnp.pad(x, ((0, n_pad - n), (0, 0)))   # rows only, no column pad

    kernel = functools.partial(_ncf_kernel, feature_dim=d)

    def const(shape):
        # Same block every grid step -> DMA'd once, stays resident in VMEM.
        return pl.BlockSpec(shape, lambda i: (0, 0))

    out = pl.pallas_call(
        kernel,
        out_shape=jax.ShapeDtypeStruct((n_pad, 1), jnp.float32),
        grid=(n_pad // tn,),
        in_specs=[pl.BlockSpec((tn, 2 * d), lambda i: (i, 0)),   # packed rows
                  const((2 * d, h1_dim)), const((1, h1_dim)),    # W1, b1
                  const((h1_dim, h2_dim)), const((1, h2_dim)),   # W2, b2
                  const((1, d)), const((1, h2_dim)),             # Wp split
                  const((1, 1))],                                # bp
        out_specs=pl.BlockSpec((tn, 1), lambda i: (i, 0)),
        compiler_params=pltpu.CompilerParams(
            dimension_semantics=("parallel",)),
    )(x, params["w1"], params["b1"], params["w2"], params["b2"],
      params["wpg"], params["wph"], params["bp"])

    return out[:n] if n_pad != n else out


# ---------------------------------------------------------------------------
# Parameter construction (torch layout) and host-side prep (transpose / split /
# bf16 cast — one-time, tiny, no padding needed).
# ---------------------------------------------------------------------------
def make_ncf_params(key, feature_dim, mlp_latent_dim=(128, 64)):
    """Deterministic torch-layout params:
         mlp:           Linear(2D, H1) -> ReLU -> Dropout -> Linear(H1, H2) -> ReLU -> Dropout
         predict_layer: Linear(D + H2, 1)
    """
    h1, h2 = mlp_latent_dim
    mlp_in = 2 * feature_dim
    pred_in = feature_dim + h2
    ks = jax.random.split(key, 6)

    def lin(kw, kb, fan_in, fan_out):
        bound = 1.0 / float(np.sqrt(fan_in))
        w = jax.random.uniform(kw, (fan_out, fan_in), jnp.float32, -bound, bound)
        b = jax.random.uniform(kb, (fan_out,), jnp.float32, -bound, bound)
        return w, b

    w1, b1 = lin(ks[0], ks[1], mlp_in, h1)
    w2, b2 = lin(ks[2], ks[3], h1, h2)
    wp, bp = lin(ks[4], ks[5], pred_in, 1)
    return {"w1": w1, "b1": b1, "w2": w2, "b2": b2, "wp": wp, "bp": bp}


def prepare_ncf_params(raw, feature_dim):
    """Transpose to (in, out), split predict weights at the gmf/h2 boundary,
    cast matmul weights to bf16 (biases & predict weights stay f32)."""
    d = feature_dim
    h1 = raw["w1"].shape[0]
    h2 = raw["w2"].shape[0]

    w1 = raw["w1"].T.astype(jnp.bfloat16)              # (2D, H1)
    b1 = raw["b1"].reshape(1, h1).astype(jnp.float32)
    w2 = raw["w2"].T.astype(jnp.bfloat16)              # (H1, H2)
    b2 = raw["b2"].reshape(1, h2).astype(jnp.float32)

    wp = raw["wp"].astype(jnp.float32)                  # (1, D + H2)
    wpg = wp[:, :d]                                      # (1, D)   — GMF part
    wph = wp[:, d:]                                      # (1, H2)  — MLP part
    bp = raw["bp"].reshape(1, 1).astype(jnp.float32)

    return {"w1": w1, "b1": b1, "w2": w2, "b2": b2,
            "wpg": wpg, "wph": wph, "bp": bp}


def ncf_reference(user, item, raw):
    """Pure-JAX f32 reference matching the PyTorch forward (inference)."""
    x = jnp.concatenate([user, item], axis=1)
    h1 = jnp.maximum(x @ raw["w1"].T + raw["b1"], 0.0)
    h2 = jnp.maximum(h1 @ raw["w2"].T + raw["b2"], 0.0)
    cs = jnp.concatenate([user * item, h2], axis=1)
    return cs @ raw["wp"].T + raw["bp"]


if __name__ == "__main__":
    key = jax.random.PRNGKey(0)
    k_u, k_v, k_p = jax.random.split(key, 3)

    batch = 8
    feature_dim = 32                   # user/item embedding width (GMF dim)
    mlp_latent_dim = (128, 64)         # torch default

    user = jax.random.normal(k_u, (batch, feature_dim), jnp.float32)
    item = jax.random.normal(k_v, (batch, feature_dim), jnp.float32)

    raw_params = make_ncf_params(k_p, feature_dim, mlp_latent_dim)
    params = prepare_ncf_params(raw_params, feature_dim)

    out = ncf_forward(user, item, params)
    out = jax.block_until_ready(out)

    ref = ncf_reference(user, item, raw_params)
    assert out.shape == (batch, 1)
    assert bool(jnp.all(jnp.isfinite(out)))
    assert bool(jnp.allclose(out, ref, rtol=5e-2, atol=5e-2)), \
        f"max abs err = {float(jnp.max(jnp.abs(out - ref)))}"
    print("KERNEL_OK")
</pallas_src>

<mosaic_0001>
module attributes {stable_mosaic.version = 11 : i64} {
  func.func @_ncf_kernel(%arg0: i32, %arg1: memref<16x64xbf16, #tpu.memory_space<vmem>>, %arg2: memref<64x128xbf16, #tpu.memory_space<vmem>>, %arg3: memref<1x128xf32, #tpu.memory_space<vmem>>, %arg4: memref<128x64xbf16, #tpu.memory_space<vmem>>, %arg5: memref<1x64xf32, #tpu.memory_space<vmem>>, %arg6: memref<1x32xf32, #tpu.memory_space<vmem>>, %arg7: memref<1x64xf32, #tpu.memory_space<vmem>>, %arg8: memref<1x1xf32, #tpu.memory_space<vmem>>, %arg9: memref<16x1xf32, #tpu.memory_space<vmem>>) attributes {dimension_semantics = [#tpu.dimension_semantics<parallel>], iteration_bounds = array<i64: 1>, scalar_prefetch = 0 : i64, scratch_operands = 0 : i64, tpu.core_type = #tpu.core_type<tc>, window_params = [{transform_indices = @transform_0, window_bounds = array<i64: 16, 64>}, {pipeline_mode = #tpu.pipeline_mode<synchronous>, transform_indices = @transform_1, window_bounds = array<i64: 64, 128>}, {pipeline_mode = #tpu.pipeline_mode<synchronous>, transform_indices = @transform_2, window_bounds = array<i64: 1, 128>}, {pipeline_mode = #tpu.pipeline_mode<synchronous>, transform_indices = @transform_3, window_bounds = array<i64: 128, 64>}, {pipeline_mode = #tpu.pipeline_mode<synchronous>, transform_indices = @transform_4, window_bounds = array<i64: 1, 64>}, {pipeline_mode = #tpu.pipeline_mode<synchronous>, transform_indices = @transform_5, window_bounds = array<i64: 1, 32>}, {pipeline_mode = #tpu.pipeline_mode<synchronous>, transform_indices = @transform_6, window_bounds = array<i64: 1, 64>}, {pipeline_mode = #tpu.pipeline_mode<synchronous>, transform_indices = @transform_7, window_bounds = array<i64: 1, 1>}, {transform_indices = @transform_8, window_bounds = array<i64: 16, 1>}]} {
    %c0 = arith.constant 0 : index
    %c0_0 = arith.constant 0 : index
    %0 = vector.load %arg1[%c0, %c0_0] : memref<16x64xbf16, #tpu.memory_space<vmem>>, vector<16x64xbf16>
    %1 = arith.extf %0 : vector<16x64xbf16> to vector<16x64xf32>
    %2 = vector.extract_strided_slice %1 {offsets = [0, 0], sizes = [16, 32], strides = [1, 1]} : vector<16x64xf32> to vector<16x32xf32>
    %3 = vector.extract_strided_slice %1 {offsets = [0, 32], sizes = [16, 32], strides = [1, 1]} : vector<16x64xf32> to vector<16x32xf32>
    %4 = arith.mulf %2, %3 : vector<16x32xf32>
    %c0_1 = arith.constant 0 : index
    %c0_2 = arith.constant 0 : index
    %5 = vector.load %arg2[%c0_1, %c0_2] : memref<64x128xbf16, #tpu.memory_space<vmem>>, vector<64x128xbf16>
    %cst = arith.constant dense<0.000000e+00> : vector<16x128xf32>
    %6 = tpu.matmul %0, %5, %cst {dimension_numbers = #tpu.dot_dimension_numbers<[1], [0], [0], [1], [0, 0, 1, 1], [], []>} : vector<16x64xbf16>, vector<64x128xbf16>, vector<16x128xf32> -> vector<16x128xf32>
    %c0_3 = arith.constant 0 : index
    %c0_4 = arith.constant 0 : index
    %7 = vector.load %arg3[%c0_3, %c0_4] : memref<1x128xf32, #tpu.memory_space<vmem>>, vector<1x128xf32>
    %8 = vector.broadcast %7 : vector<1x128xf32> to vector<16x128xf32>
    %9 = arith.addf %6, %8 : vector<16x128xf32>
    %cst_5 = arith.constant 0.000000e+00 : f32
    %10 = vector.broadcast %cst_5 : f32 to vector<16x128xf32>
    %11 = arith.maximumf %9, %10 : vector<16x128xf32>
    %12 = arith.truncf %11 : vector<16x128xf32> to vector<16x128xbf16>
    %c0_6 = arith.constant 0 : index
    %c0_7 = arith.constant 0 : index
    %13 = vector.load %arg4[%c0_6, %c0_7] : memref<128x64xbf16, #tpu.memory_space<vmem>>, vector<128x64xbf16>
    %cst_8 = arith.constant dense<0.000000e+00> : vector<16x64xf32>
    %14 = tpu.matmul %12, %13, %cst_8 {dimension_numbers = #tpu.dot_dimension_numbers<[1], [0], [0], [1], [0, 0, 1, 1], [], []>} : vector<16x128xbf16>, vector<128x64xbf16>, vector<16x64xf32> -> vector<16x64xf32>
    %c0_9 = arith.constant 0 : index
    %c0_10 = arith.constant 0 : index
    %15 = vector.load %arg5[%c0_9, %c0_10] : memref<1x64xf32, #tpu.memory_space<vmem>>, vector<1x64xf32>
    %16 = vector.broadcast %15 : vector<1x64xf32> to vector<16x64xf32>
    %17 = arith.addf %14, %16 : vector<16x64xf32>
    %cst_11 = arith.constant 0.000000e+00 : f32
    %18 = vector.broadcast %cst_11 : f32 to vector<16x64xf32>
    %19 = arith.maximumf %17, %18 : vector<16x64xf32>
    %c0_12 = arith.constant 0 : index
    %c0_13 = arith.constant 0 : index
    %20 = vector.load %arg6[%c0_12, %c0_13] : memref<1x32xf32, #tpu.memory_space<vmem>>, vector<1x32xf32>
    %21 = vector.broadcast %20 : vector<1x32xf32> to vector<16x32xf32>
    %22 = arith.mulf %4, %21 : vector<16x32xf32>
    %cst_14 = arith.constant dense<0.000000e+00> : vector<16xf32>
    %23 = vector.multi_reduction <add>, %22, %cst_14 [1] : vector<16x32xf32> to vector<16xf32>
    %24 = vector.shape_cast %23 : vector<16xf32> to vector<16x1xf32>
    %c0_15 = arith.constant 0 : index
    %c0_16 = arith.constant 0 : index
    %25 = vector.load %arg7[%c0_15, %c0_16] : memref<1x64xf32, #tpu.memory_space<vmem>>, vector<1x64xf32>
    %26 = vector.broadcast %25 : vector<1x64xf32> to vector<16x64xf32>
    %27 = arith.mulf %19, %26 : vector<16x64xf32>
    %cst_17 = arith.constant dense<0.000000e+00> : vector<16xf32>
    %28 = vector.multi_reduction <add>, %27, %cst_17 [1] : vector<16x64xf32> to vector<16xf32>
    %29 = vector.shape_cast %28 : vector<16xf32> to vector<16x1xf32>
    %30 = arith.addf %24, %29 : vector<16x1xf32>
    %c0_18 = arith.constant 0 : index
    %c0_19 = arith.constant 0 : index
    %31 = vector.load %arg8[%c0_18, %c0_19] : memref<1x1xf32, #tpu.memory_space<vmem>>, vector<1x1xf32>
    %32 = vector.broadcast %31 : vector<1x1xf32> to vector<16x1xf32>
    %33 = arith.addf %30, %32 : vector<16x1xf32>
    %c0_20 = arith.constant 0 : index
    %c0_21 = arith.constant 0 : index
    %34 = vector.load %arg9[%c0_20, %c0_21] : memref<16x1xf32, #tpu.memory_space<vmem>>, vector<16x1xf32>
    tpu.vector_store %arg9[%c0_20, %c0_21], %33 {strides = array<i32>} : memref<16x1xf32, #tpu.memory_space<vmem>>, vector<16x1xf32>,
    return
  }
  func.func @transform_0(%arg0: i32) -> (i32, i32) {
    %c0_i32 = arith.constant 0 : i32
    %c0_i32_0 = arith.constant 0 : i32
    return %arg0, %c0_i32 : i32, i32
  }
  func.func @transform_1(%arg0: i32) -> (i32, i32) {
    %c0_i32 = arith.constant 0 : i32
    %c0_i32_0 = arith.constant 0 : i32
    %c0_i32_1 = arith.constant 0 : i32
    return %c0_i32, %c0_i32_0 : i32, i32
  }
  func.func @transform_2(%arg0: i32) -> (i32, i32) {
    %c0_i32 = arith.constant 0 : i32
    %c0_i32_0 = arith.constant 0 : i32
    %c0_i32_1 = arith.constant 0 : i32
    return %c0_i32, %c0_i32_0 : i32, i32
  }
  func.func @transform_3(%arg0: i32) -> (i32, i32) {
    %c0_i32 = arith.constant 0 : i32
    %c0_i32_0 = arith.constant 0 : i32
    %c0_i32_1 = arith.constant 0 : i32
    return %c0_i32, %c0_i32_0 : i32, i32
  }
  func.func @transform_4(%arg0: i32) -> (i32, i32) {
    %c0_i32 = arith.constant 0 : i32
    %c0_i32_0 = arith.constant 0 : i32
    %c0_i32_1 = arith.constant 0 : i32
    return %c0_i32, %c0_i32_0 : i32, i32
  }
  func.func @transform_5(%arg0: i32) -> (i32, i32) {
    %c0_i32 = arith.constant 0 : i32
    %c0_i32_0 = arith.constant 0 : i32
    %c0_i32_1 = arith.constant 0 : i32
    return %c0_i32, %c0_i32_0 : i32, i32
  }
  func.func @transform_6(%arg0: i32) -> (i32, i32) {
    %c0_i32 = arith.constant 0 : i32
    %c0_i32_0 = arith.constant 0 : i32
    %c0_i32_1 = arith.constant 0 : i32
    return %c0_i32, %c0_i32_0 : i32, i32
  }
  func.func @transform_7(%arg0: i32) -> (i32, i32) {
    %c0_i32 = arith.constant 0 : i32
    %c0_i32_0 = arith.constant 0 : i32
    %c0_i32_1 = arith.constant 0 : i32
    return %c0_i32, %c0_i32_0 : i32, i32
  }
  func.func @transform_8(%arg0: i32) -> (i32, i32) {
    %c0_i32 = arith.constant 0 : i32
    %c0_i32_0 = arith.constant 0 : i32
    return %arg0, %c0_i32 : i32, i32
  }
}

</mosaic_0001>

<llo_original>
// kernel: tpu_custom_call.1
$region0: #{tpu_custom_call.1}
  #allocation0 [shape = 'u32[]', space=smem, size = 0x4, offset = 0x4, fixed_abs, tag = 'smem constant byte address 0x4 - core index']
  #allocation1 [shape = 'u32[144,128]{1,0:T(1,128)}', space=vmem, size = 0x12000, scoped, tag = 'internal scratch']
  #allocation2 [shape = 'f32[1,1]{1,0:T(1,128)S(1)}', space=vmem, size = 0x200, scoped, tag = 'scoped memory for tpu_custom_call.1']
  %s0 = inlined_call_operand.vmem [shape: bf16[16,64], index: 0, kind: input, shape index: {}]
  %s1 = inlined_call_operand.vmem [shape: bf16[64,128], index: 1, kind: input, shape index: {}]
  %s2 = inlined_call_operand.vmem [shape: f32[1,128], index: 2, kind: input, shape index: {}]
  %s3 = inlined_call_operand.vmem [shape: bf16[128,64], index: 3, kind: input, shape index: {}]
  %s4 = inlined_call_operand.vmem [shape: f32[1,64], index: 4, kind: input, shape index: {}]
  %s5 = inlined_call_operand.vmem [shape: f32[1,32], index: 5, kind: input, shape index: {}]
  %s6 = inlined_call_operand.vmem [shape: f32[1,64], index: 6, kind: input, shape index: {}]
  %s7 = inlined_call_operand.<no memory space> [shape: f32[1,1], index: 7, kind: input, shape index: {}]
  %s8 = inlined_call_operand.vmem [shape: f32[16,1], index: 8, kind: output, shape index: {}]
  %s9 = sld [smem:[#allocation0]]
  $region42: #{tpu_custom_call.1} parent=0
    _
  %s11 = ssub.s32 1, %s9
  %s12 = scalar_select 0, %s11, %s9
  %v13 = vstv %s7
  %14 = vst [vmem:[#allocation2] sm:$0x1] %v13
  // Predicated region
  $region2: #{tpu_custom_call.1} parent=0 // pred_check
    _
  $region3: #{tpu_custom_call.1} parent=0 // pred_check_branch
    %16 = sbr.rel (0) target = $region5
  $region4: #{tpu_custom_call.1} parent=0 // pred_region
    _
  $region5: #{tpu_custom_call.1} parent=0 // pred_fallthru
    _
  // Predicated region
  $region6: #{tpu_custom_call.1} parent=0 // pred_check
    _
  $region7: #{tpu_custom_call.1} parent=0 // pred_check_branch
    %18 = sbr.rel (0) target = $region9
  $region8: #{tpu_custom_call.1} parent=0 // pred_region
    _
  $region9: #{tpu_custom_call.1} parent=0 // pred_fallthru
    _
  // Predicated region
  $region10: #{tpu_custom_call.1} parent=0 // pred_check
    _
  $region11: #{tpu_custom_call.1} parent=0 // pred_check_branch
    %20 = sbr.rel (0) target = $region13
  $region12: #{tpu_custom_call.1} parent=0 // pred_region
    _
  $region13: #{tpu_custom_call.1} parent=0 // pred_fallthru
    _
  // Predicated region
  $region14: #{tpu_custom_call.1} parent=0 // pred_check
    _
  $region15: #{tpu_custom_call.1} parent=0 // pred_check_branch
    %22 = sbr.rel (0) target = $region17
  $region16: #{tpu_custom_call.1} parent=0 // pred_region
    _
  $region17: #{tpu_custom_call.1} parent=0 // pred_fallthru
    _
  // Predicated region
  $region18: #{tpu_custom_call.1} parent=0 // pred_check
    _
  $region19: #{tpu_custom_call.1} parent=0 // pred_check_branch
    %24 = sbr.rel (0) target = $region21
  $region20: #{tpu_custom_call.1} parent=0 // pred_region
    _
  $region21: #{tpu_custom_call.1} parent=0 // pred_fallthru
    _
  // Predicated region
  $region22: #{tpu_custom_call.1} parent=0 // pred_check
    _
  $region23: #{tpu_custom_call.1} parent=0 // pred_check_branch
    %26 = sbr.rel (0) target = $region25
  $region24: #{tpu_custom_call.1} parent=0 // pred_region
    _
  $region25: #{tpu_custom_call.1} parent=0 // pred_fallthru
    _
  // Predicated region
  $region26: #{tpu_custom_call.1} parent=0 // pred_check
    _
  $region27: #{tpu_custom_call.1} parent=0 // pred_check_branch
    %28 = sbr.rel (0) target = $region29
  $region28: #{tpu_custom_call.1} parent=0 // pred_region
    _
  $region29: #{tpu_custom_call.1} parent=0 // pred_fallthru
    _
  // Predicated region
  $region30: #{tpu_custom_call.1} parent=0 // pred_check
    _
  $region31: #{tpu_custom_call.1} parent=0 // pred_check_branch
    %30 = sbr.rel (0) target = $region33
  $region32: #{tpu_custom_call.1} parent=0 // pred_region
    _
  $region33: #{tpu_custom_call.1} parent=0 // pred_fallthru
    _
  %v32 = vld [vmem:[%s0] sm:$0xf]
  %v33 = vld [vmem:[%s0 + $0x4] sm:$0xf]
  %v34 = vunpack.c.l.bf16 %v32
  %v35 = vunpack.c.l.bf16 %v33
  %38 = vrot.lane.b32.xlu0 %v34, 96
  %v39 = vpop.permute.xlu0 %38
  %40 = vrot.lane.b32.xlu0 %v35, 96
  %v41 = vpop.permute.xlu0 %40
  %v44 = vmul.f32 %v34, %v39
  %v45 = vmul.f32 %v35, %v41
  %v46 = vld [vmem:[%s1] sm:$0xf]
  %v47 = vld [vmem:[%s1 + $0x4] sm:$0xf]
  %v48 = vld [vmem:[%s1 + $0x8] sm:$0xf]
  %v49 = vld [vmem:[%s1 + $0xc] sm:$0xf]
  %v50 = vld [vmem:[%s1 + $0x10] sm:$0xf]
  %v51 = vld [vmem:[%s1 + $0x14] sm:$0xf]
  %v52 = vld [vmem:[%s1 + $0x18] sm:$0xf]
  %v53 = vld [vmem:[%s1 + $0x1c] sm:$0xf]
  %v54 = vld [vmem:[%s2] sm:$0x1]
  %v56 = vlaneseq
  %v57 = vshrl.u32 %v56, 7
  %v58 = vsub.s32 0, %v57
  %v59 = vrot.slane %v54, %v58
  %v63 = vunpack.c.l.b16 %v32
  %v64 = vunpack.c.l.b16 %v33
  %v65 = vpack.c.b16 %v64, %v63
  %v74 = vunpack.c.l.b16 %v46
  %v75 = vunpack.c.l.b16 %v47
  %v76 = vunpack.c.l.b16 %v48
  %v77 = vunpack.c.l.b16 %v49
  %v78 = vunpack.c.l.b16 %v50
  %v79 = vunpack.c.l.b16 %v51
  %v80 = vunpack.c.l.b16 %v52
  %v81 = vunpack.c.l.b16 %v53
  %v82 = vpack.c.b16 %v75, %v74
  %v83 = vpack.c.b16 %v77, %v76
  %v84 = vpack.c.b16 %v79, %v78
  %v85 = vpack.c.b16 %v81, %v80
  %vm90 = vcmask 523264
  %v92 = vsel %vm90, %v65, 0
  %94 = vmatprep.subr.bf16.mxu0 0
  %95 = vmatpush1.bf16.msra.mxu0 0
  %96 = vmatprep.subr.bf16.mxu0 0
  %97 = vmatpush1.bf16.msra.mxu0 0
  %98 = vmatprep.subr.bf16.mxu0 0
  %99 = vmatpush1.bf16.msra.mxu0 0
  %100 = vmatprep.subr.bf16.mxu0 0
  %101 = vmatpush1.bf16.msra.mxu0 0
  %102 = vmatprep.subr.bf16.mxu0 0
  %103 = vmatpush1.bf16.msra.mxu0 %v85
  %104 = vmatprep.subr.bf16.mxu0 0
  %105 = vmatpush1.bf16.msra.mxu0 %v84
  %106 = vmatprep.subr.bf16.mxu0 0
  %107 = vmatpush1.bf16.msra.mxu0 %v83
  %108 = vmatprep.subr.bf16.mxu0 0
  %109 = vmatpush1.bf16.msra.mxu0 %v82
  %110 = vmatprep.subr.bf16.mxu0 0
  %111 = vmatpush2.bf16.msra.mxu0 0
  %112 = vmatprep.subr.bf16.mxu0 0
  %113 = vmatpush2.bf16.msra.mxu0 0
  %114 = vmatprep.subr.bf16.mxu0 0
  %115 = vmatpush2.bf16.msra.mxu0 0
  %116 = vmatprep.subr.bf16.mxu0 0
  %117 = vmatpush2.bf16.msra.mxu0 0
  %118 = vmatprep.subr.bf16.mxu0 0
  %119 = vmatpush2.bf16.msra.mxu0 0
  %120 = vmatprep.subr.bf16.mxu0 0
  %121 = vmatpush2.bf16.msra.mxu0 0
  %122 = vmatprep.subr.bf16.mxu0 0
  %123 = vmatpush2.bf16.msra.mxu0 0
  %124 = vmatprep.subr.bf16.mxu0 0
  %125 = vmatpush2.bf16.msra.mxu0 0
  %126 = vmatprep.mubr.bf16.mxu0 0
  %127 = vmatmul.mubr.bf16.gmra.mxu0 %v92
  %v128 = vpop.f32.mrf.mxu0
  %v129 = vadd.f32 %v59, %v128
  %v130 = vpop.f32.mrf.mxu0
  %v131 = vpop.f32.mrf.mxu0
  %v132 = vadd.f32 %v59, %v131
  %v133 = vpop.f32.mrf.mxu0
  %134 = vdwg.mxu0
  %v135 = vmax.f32 %v129, 0.0
  %v136 = vmax.f32 %v132, 0.0
  %v137 = vpack.c.bf16 %v136, %v135
  %v138 = vld [vmem:[%s3] sm:$0xf]
  %v139 = vld [vmem:[%s3 + $0x4] sm:$0xf]
  %v140 = vld [vmem:[%s3 + $0x8] sm:$0xf]
  %v141 = vld [vmem:[%s3 + $0xc] sm:$0xf]
  %v142 = vld [vmem:[%s3 + $0x10] sm:$0xf]
  %v143 = vld [vmem:[%s3 + $0x14] sm:$0xf]
  %v144 = vld [vmem:[%s3 + $0x18] sm:$0xf]
  %v145 = vld [vmem:[%s3 + $0x1c] sm:$0xf]
  %v146 = vld [vmem:[%s3 + $0x20] sm:$0xf]
  %v147 = vld [vmem:[%s3 + $0x24] sm:$0xf]
  %v148 = vld [vmem:[%s3 + $0x28] sm:$0xf]
  %v149 = vld [vmem:[%s3 + $0x2c] sm:$0xf]
  %v150 = vld [vmem:[%s3 + $0x30] sm:$0xf]
  %v151 = vld [vmem:[%s3 + $0x34] sm:$0xf]
  %v152 = vld [vmem:[%s3 + $0x38] sm:$0xf]
  %v153 = vld [vmem:[%s3 + $0x3c] sm:$0xf]
  %v154 = vld [vmem:[%s4] sm:$0x1]
  %v156 = vlaneseq
  %v157 = vshrl.u32 %v156, 7
  %v158 = vsub.s32 0, %v157
  %v159 = vrot.slane %v154, %v158
  %v177 = vunpack.c.l.b16 %v138
  %v178 = vunpack.c.l.b16 %v139
  %v179 = vunpack.c.l.b16 %v140
  %v180 = vunpack.c.l.b16 %v141
  %v181 = vunpack.c.l.b16 %v142
  %v182 = vunpack.c.l.b16 %v143
  %v183 = vunpack.c.l.b16 %v144
  %v184 = vunpack.c.l.b16 %v145
  %v185 = vunpack.c.l.b16 %v146
  %v186 = vunpack.c.l.b16 %v147
  %v187 = vunpack.c.l.b16 %v148
  %v188 = vunpack.c.l.b16 %v149
  %v189 = vunpack.c.l.b16 %v150
  %v190 = vunpack.c.l.b16 %v151
  %v191 = vunpack.c.l.b16 %v152
  %v192 = vunpack.c.l.b16 %v153
  %v193 = vpack.c.b16 %v178, %v177
  %v194 = vpack.c.b16 %v180, %v179
  %v195 = vpack.c.b16 %v182, %v181
  %v196 = vpack.c.b16 %v184, %v183
  %v197 = vpack.c.b16 %v186, %v185
  %v198 = vpack.c.b16 %v188, %v187
  %v199 = vpack.c.b16 %v190, %v189
  %v200 = vpack.c.b16 %v192, %v191
  %209 = vmatprep.subr.bf16.mxu0 0
  %210 = vmatpush1.bf16.msra.mxu0 %v200
  %211 = vmatprep.subr.bf16.mxu0 0
  %212 = vmatpush1.bf16.msra.mxu0 %v199
  %213 = vmatprep.subr.bf16.mxu0 0
  %214 = vmatpush1.bf16.msra.mxu0 %v198
  %215 = vmatprep.subr.bf16.mxu0 0
  %216 = vmatpush1.bf16.msra.mxu0 %v197
  %217 = vmatprep.subr.bf16.mxu0 0
  %218 = vmatpush1.bf16.msra.mxu0 %v196
  %219 = vmatprep.subr.bf16.mxu0 0
  %220 = vmatpush1.bf16.msra.mxu0 %v195
  %221 = vmatprep.subr.bf16.mxu0 0
  %222 = vmatpush1.bf16.msra.mxu0 %v194
  %223 = vmatprep.subr.bf16.mxu0 0
  %224 = vmatpush1.bf16.msra.mxu0 %v193
  %225 = vmatprep.subr.bf16.mxu0 0
  %226 = vmatpush2.bf16.msra.mxu0 0
  %227 = vmatprep.subr.bf16.mxu0 0
  %228 = vmatpush2.bf16.msra.mxu0 0
  %229 = vmatprep.subr.bf16.mxu0 0
  %230 = vmatpush2.bf16.msra.mxu0 0
  %231 = vmatprep.subr.bf16.mxu0 0
  %232 = vmatpush2.bf16.msra.mxu0 0
  %233 = vmatprep.subr.bf16.mxu0 0
  %234 = vmatpush2.bf16.msra.mxu0 0
  %235 = vmatprep.subr.bf16.mxu0 0
  %236 = vmatpush2.bf16.msra.mxu0 0
  %237 = vmatprep.subr.bf16.mxu0 0
  %238 = vmatpush2.bf16.msra.mxu0 0
  %239 = vmatprep.subr.bf16.mxu0 0
  %240 = vmatpush2.bf16.msra.mxu0 0
  %241 = vmatprep.mubr.bf16.mxu0 0
  %242 = vmatmul.mubr.bf16.gmra.mxu0 %v137
  %v243 = vpop.f32.mrf.mxu0
  %v244 = vadd.f32 %v159, %v243
  %v245 = vpop.f32.mrf.mxu0
  %v246 = vpop.f32.mrf.mxu0
  %v247 = vadd.f32 %v159, %v246
  %v248 = vpop.f32.mrf.mxu0
  %249 = vdwg.mxu0
  %v250 = vmax.f32 %v244, 0.0
  %v251 = vmax.f32 %v247, 0.0
  %v252 = vld [vmem:[%s5] sm:$0x1]
  %v254 = vlaneseq
  %v255 = vshrl.u32 %v254, 7
  %v256 = vsub.s32 0, %v255
  %v257 = vrot.slane %v252, %v256
  %v259 = vmul.f32 %v44, %v257
  %v260 = vmul.f32 %v45, %v257
  %vm261 = vcmask 261120
  %v262 = vsel %vm261, %v259, 0.0
  %263 = vadd.xlane.f32.xlu0 %v262
  %v264 = vpop.xlane.xlu0 %263
  %v265 = vsel %vm261, %v260, 0.0
  %266 = vadd.xlane.f32.xlu0 %v265
  %v267 = vpop.xlane.xlu0 %266
  %v268 = vld [vmem:[%s6] sm:$0x1]
  %v270 = vlaneseq
  %v271 = vshrl.u32 %v270, 7
  %v272 = vsub.s32 0, %v271
  %v273 = vrot.slane %v268, %v272
  %v275 = vmul.f32 %v250, %v273
  %v276 = vmul.f32 %v251, %v273
  %v277 = vsel %vm90, %v275, 0.0
  %278 = vadd.xlane.f32.xlu0 %v277
  %v279 = vpop.xlane.xlu0 %278
  %v280 = vsel %vm90, %v276, 0.0
  %281 = vadd.xlane.f32.xlu0 %v280
  %v282 = vpop.xlane.xlu0 %281
  %v283 = vadd.f32 %v264, %v279
  %v284 = vadd.f32 %v267, %v282
  %v285 = vld [vmem:[#allocation2] sm:$0x1]
  %v287 = vlaneseq
  %v288 = vshrl.u32 %v287, 7
  %v289 = vsub.s32 0, %v288
  %v290 = vrot.slane %v285, %v289
  %v292 = vadd.f32 %v283, %v290
  %v293 = vadd.f32 %v284, %v290
  %vm294 = vcmask 7168
  %295 = vst.msk [vmem:[%s8] sm:$0xff] %vm294, %v292
  %296 = vst.msk [vmem:[%s8 + $0x8] sm:$0xff] %vm294, %v293
  // Predicated region
  $region34: #{tpu_custom_call.1} parent=0 // pred_check
    _
  $region35: #{tpu_custom_call.1} parent=0 // pred_check_branch
    %298 = sbr.rel (0) target = $region37
  $region36: #{tpu_custom_call.1} parent=0 // pred_region
    _
  $region37: #{tpu_custom_call.1} parent=0 // pred_fallthru
    _
  // Predicated region
  $region38: #{tpu_custom_call.1} parent=0 // pred_check
    _
  $region39: #{tpu_custom_call.1} parent=0 // pred_check_branch
    %300 = sbr.rel (0) target = $region41
  $region40: #{tpu_custom_call.1} parent=0 // pred_region
    _
  $region41: #{tpu_custom_call.1} parent=0 // pred_fallthru
    _

</llo_original>
